<compile_context>
chip_gen: v5e
topology: v5e:2x2
jax: 0.10.0
libtpu: 0.0.40
codegen_flags: <defaults>
</compile_context>

<pallas_src>
import functools

import jax
import jax.numpy as jnp
import numpy as np
from jax.experimental import pallas as pl
from jax.experimental.pallas import tpu as pltpu


def _downsample_kernel(xp_ref, w_ref, scale_ref, shift_ref, o_ref, *, th, Wo, Cin):
    # xp_ref:    (Hg, 2, Wg, 2*Cin)   phase view of one zero-padded image:
    #            xp_ref[gh, ph, gw, pw*Cin + c] == x_pad[2*gh + ph, 2*gw + pw, c]
    # w_ref:     (9*Cin, Cout)        conv weight, rows ordered (dh, dw, cin)
    # scale_ref: (1, Cout)            folded eval-mode BatchNorm scale
    # shift_ref: (1, Cout)            folded eval-mode BatchNorm shift
    # o_ref:     (th, Wo, Cout)       output row block (NHWC)
    Cout = o_ref.shape[-1]
    ho0 = pl.multiple_of(pl.program_id(1) * th, th)   # first output row of block

    # im2col: tap (dh, dw) needs x_pad[2*ho + dh, 2*wo + dw, :], which lives at
    # parity (dh % 2, dw % 2) with group offsets (dh // 2, dw // 2) -> all the
    # slices below are contiguous (the stride-2 vanished into the phase view).
    taps = []
    for dh in range(3):
        for dw in range(3):
            slab = xp_ref[pl.ds(ho0 + dh // 2, th),                 # H groups
                          dh % 2,                                   # H parity
                          (dw // 2):(dw // 2) + Wo,                 # W groups
                          (dw % 2) * Cin:(dw % 2 + 1) * Cin]        # W parity x C
            taps.append(slab.reshape(th * Wo, Cin))
    lhs = jnp.concatenate(taps, axis=-1)                            # (th*Wo, 9*Cin)

    # Single wide MXU matmul (K = 9*Cin) instead of 9 tiny ones.
    acc = jnp.dot(lhs, w_ref[...], preferred_element_type=jnp.float32)

    y = acc * scale_ref[...] + shift_ref[...]                       # BatchNorm (eval)
    y = jnp.maximum(y, 0.0)                                         # ReLU
    o_ref[...] = y.reshape(th, Wo, Cout).astype(o_ref.dtype)


@jax.jit
def downsample_conv_forward(x_nchw, conv_w_oihw, bn_gamma, bn_beta,
                            bn_mean, bn_var, eps=1e-5):
    """x_nchw: (N, 32, H, W) -> (N, 32, H//2, W//2), matching the PyTorch module."""
    N, Cin, H, W = x_nchw.shape
    Cout = conv_w_oihw.shape[0]
    assert H % 2 == 0 and W % 2 == 0, "even spatial dims expected"
    Ho, Wo = H // 2, W // 2
    Hg, Wg = (H + 2) // 2, (W + 2) // 2          # padded phase groups = Ho+1, Wo+1

    # Fold eval-mode BatchNorm into a per-channel affine.
    # TODO(synk): training-mode BatchNorm (batch statistics + running-stat
    #             updates) is not implemented; this is the inference forward.
    bn_scale = bn_gamma / jnp.sqrt(bn_var + eps)
    bn_shift = bn_beta - bn_mean * bn_scale

    # NCHW -> NHWC, 1-pixel zero pad, then a *free* reshape exposing the
    # stride-2 phases: (N, Hp, Wp, C) -> (N, Hp//2, 2, Wp//2, 2*C).
    x_nhwc = jnp.transpose(x_nchw, (0, 2, 3, 1))
    x_pad = jnp.pad(x_nhwc, ((0, 0), (1, 1), (1, 1), (0, 0)))
    x_ph = x_pad.reshape(N, Hg, 2, Wg, 2 * Cin)

    # (Cout, Cin, 3, 3) -> (3, 3, Cin, Cout) -> (9*Cin, Cout); rows = (dh, dw, ci).
    w_mat = jnp.transpose(conv_w_oihw, (2, 3, 1, 0)).reshape(9 * Cin, Cout)

    # Output-row tile: largest of {16, 8, 4, 2, 1} dividing Ho.
    th = next(t for t in (16, 8, 4, 2, 1) if Ho % t == 0)
    R = Ho // th

    kernel = functools.partial(_downsample_kernel, th=th, Wo=Wo, Cin=Cin)

    out_nhwc = pl.pallas_call(
        kernel,
        out_shape=jax.ShapeDtypeStruct((N, Ho, Wo, Cout), x_nchw.dtype),
        grid=(N, R),
        in_specs=[
            # Whole phase-reshaped padded image per batch element; block index
            # depends only on n, so it is fetched once while r iterates.
            pl.BlockSpec((None, Hg, 2, Wg, 2 * Cin), lambda n, r: (n, 0, 0, 0, 0)),
            pl.BlockSpec((9 * Cin, Cout), lambda n, r: (0, 0)),
            pl.BlockSpec((1, Cout), lambda n, r: (0, 0)),
            pl.BlockSpec((1, Cout), lambda n, r: (0, 0)),
        ],
        out_specs=pl.BlockSpec((None, th, Wo, Cout), lambda n, r: (n, r, 0, 0)),
        compiler_params=pltpu.CompilerParams(
            dimension_semantics=("parallel", "parallel"),
            vmem_limit_bytes=32 * 1024 * 1024),
    )(x_ph, w_mat, bn_scale.reshape(1, Cout), bn_shift.reshape(1, Cout))

    return jnp.transpose(out_nhwc, (0, 3, 1, 2))


def downsample_conv_reference(x_nchw, conv_w_oihw, bn_gamma, bn_beta,
                              bn_mean, bn_var, eps=1e-5):
    """Pure-JAX reference matching the PyTorch forward (eval mode)."""
    x0 = jax.lax.conv_general_dilated(
        x_nchw, conv_w_oihw, window_strides=(2, 2), padding=((1, 1), (1, 1)),
        dimension_numbers=("NCHW", "OIHW", "NCHW"))
    scale = bn_gamma / jnp.sqrt(bn_var + eps)
    shift = bn_beta - bn_mean * scale
    y = x0 * scale[None, :, None, None] + shift[None, :, None, None]
    return jnp.maximum(y, 0.0)


if __name__ == "__main__":
    key = jax.random.PRNGKey(0)
    N, C, H, W = 2, 32, 16, 16        # module hard-codes 32 in/out channels
    ks = jax.random.split(key, 6)

    x = jax.random.normal(ks[0], (N, C, H, W), jnp.float32)
    conv_w = 0.05 * jax.random.normal(ks[1], (C, C, 3, 3), jnp.float32)
    bn_gamma = 1.0 + 0.1 * jax.random.normal(ks[2], (C,), jnp.float32)
    bn_beta = 0.1 * jax.random.normal(ks[3], (C,), jnp.float32)
    bn_mean = 0.1 * jax.random.normal(ks[4], (C,), jnp.float32)
    bn_var = jnp.abs(jax.random.normal(ks[5], (C,), jnp.float32)) + 0.5

    out = downsample_conv_forward(x, conv_w, bn_gamma, bn_beta, bn_mean, bn_var)
    out = jax.block_until_ready(out)

    ref = downsample_conv_reference(x, conv_w, bn_gamma, bn_beta, bn_mean, bn_var)
    assert out.shape == (N, C, H // 2, W // 2)
    np.testing.assert_allclose(np.asarray(out), np.asarray(ref),
                               rtol=2e-4, atol=2e-4)
    print("KERNEL_OK")
</pallas_src>

<mosaic_0001>
module attributes {stable_mosaic.version = 11 : i64} {
  func.func @_downsample_kernel(%arg0: i32, %arg1: i32, %arg2: memref<1x9x2x9x64xf32, #tpu.memory_space<vmem>>, %arg3: memref<288x32xf32, #tpu.memory_space<vmem>>, %arg4: memref<1x32xf32, #tpu.memory_space<vmem>>, %arg5: memref<1x32xf32, #tpu.memory_space<vmem>>, %arg6: memref<1x8x8x32xf32, #tpu.memory_space<vmem>>) attributes {dimension_semantics = [#tpu.dimension_semantics<parallel>, #tpu.dimension_semantics<parallel>], iteration_bounds = array<i64: 2, 1>, scalar_prefetch = 0 : i64, scratch_operands = 0 : i64, tpu.core_type = #tpu.core_type<tc>, window_params = [{transform_indices = @transform_0, window_bounds = array<i64: 1, 9, 2, 9, 64>}, {pipeline_mode = #tpu.pipeline_mode<synchronous>, transform_indices = @transform_1, window_bounds = array<i64: 288, 32>}, {pipeline_mode = #tpu.pipeline_mode<synchronous>, transform_indices = @transform_2, window_bounds = array<i64: 1, 32>}, {pipeline_mode = #tpu.pipeline_mode<synchronous>, transform_indices = @transform_3, window_bounds = array<i64: 1, 32>}, {transform_indices = @transform_4, window_bounds = array<i64: 1, 8, 8, 32>}]} {
    %c8_i32 = arith.constant 8 : i32
    %0 = arith.muli %arg1, %c8_i32 : i32
    %1 = tpu.assume_multiple %0, 8 : i32
    %c0_i32 = arith.constant 0 : i32
    %2 = arith.addi %1, %c0_i32 : i32
    %c0 = arith.constant 0 : index
    %3 = arith.index_cast %2 : i32 to index
    %c0_0 = arith.constant 0 : index
    %c0_1 = arith.constant 0 : index
    %c0_2 = arith.constant 0 : index
    %4 = vector.load %arg2[%c0, %3, %c0_0, %c0_1, %c0_2] : memref<1x9x2x9x64xf32, #tpu.memory_space<vmem>>, vector<1x8x1x8x32xf32>
    %5 = vector.shape_cast %4 : vector<1x8x1x8x32xf32> to vector<8x8x32xf32>
    %6 = vector.shape_cast %5 : vector<8x8x32xf32> to vector<64x32xf32>
    %c0_i32_3 = arith.constant 0 : i32
    %7 = arith.addi %1, %c0_i32_3 : i32
    %c0_4 = arith.constant 0 : index
    %8 = arith.index_cast %7 : i32 to index
    %c0_5 = arith.constant 0 : index
    %c0_6 = arith.constant 0 : index
    %c32 = arith.constant 32 : index
    %9 = vector.load %arg2[%c0_4, %8, %c0_5, %c0_6, %c32] : memref<1x9x2x9x64xf32, #tpu.memory_space<vmem>>, vector<1x8x1x8x32xf32>
    %10 = vector.shape_cast %9 : vector<1x8x1x8x32xf32> to vector<8x8x32xf32>
    %11 = vector.shape_cast %10 : vector<8x8x32xf32> to vector<64x32xf32>
    %c0_i32_7 = arith.constant 0 : i32
    %12 = arith.addi %1, %c0_i32_7 : i32
    %c0_8 = arith.constant 0 : index
    %13 = arith.index_cast %12 : i32 to index
    %c0_9 = arith.constant 0 : index
    %c1 = arith.constant 1 : index
    %c0_10 = arith.constant 0 : index
    %14 = vector.load %arg2[%c0_8, %13, %c0_9, %c1, %c0_10] : memref<1x9x2x9x64xf32, #tpu.memory_space<vmem>>, vector<1x8x1x8x32xf32>
    %15 = vector.shape_cast %14 : vector<1x8x1x8x32xf32> to vector<8x8x32xf32>
    %16 = vector.shape_cast %15 : vector<8x8x32xf32> to vector<64x32xf32>
    %c0_i32_11 = arith.constant 0 : i32
    %17 = arith.addi %1, %c0_i32_11 : i32
    %c0_12 = arith.constant 0 : index
    %18 = arith.index_cast %17 : i32 to index
    %c1_13 = arith.constant 1 : index
    %c0_14 = arith.constant 0 : index
    %c0_15 = arith.constant 0 : index
    %19 = vector.load %arg2[%c0_12, %18, %c1_13, %c0_14, %c0_15] : memref<1x9x2x9x64xf32, #tpu.memory_space<vmem>>, vector<1x8x1x8x32xf32>
    %20 = vector.shape_cast %19 : vector<1x8x1x8x32xf32> to vector<8x8x32xf32>
    %21 = vector.shape_cast %20 : vector<8x8x32xf32> to vector<64x32xf32>
    %c0_i32_16 = arith.constant 0 : i32
    %22 = arith.addi %1, %c0_i32_16 : i32
    %c0_17 = arith.constant 0 : index
    %23 = arith.index_cast %22 : i32 to index
    %c1_18 = arith.constant 1 : index
    %c0_19 = arith.constant 0 : index
    %c32_20 = arith.constant 32 : index
    %24 = vector.load %arg2[%c0_17, %23, %c1_18, %c0_19, %c32_20] : memref<1x9x2x9x64xf32, #tpu.memory_space<vmem>>, vector<1x8x1x8x32xf32>
    %25 = vector.shape_cast %24 : vector<1x8x1x8x32xf32> to vector<8x8x32xf32>
    %26 = vector.shape_cast %25 : vector<8x8x32xf32> to vector<64x32xf32>
    %c0_i32_21 = arith.constant 0 : i32
    %27 = arith.addi %1, %c0_i32_21 : i32
    %c0_22 = arith.constant 0 : index
    %28 = arith.index_cast %27 : i32 to index
    %c1_23 = arith.constant 1 : index
    %c1_24 = arith.constant 1 : index
    %c0_25 = arith.constant 0 : index
    %29 = vector.load %arg2[%c0_22, %28, %c1_23, %c1_24, %c0_25] : memref<1x9x2x9x64xf32, #tpu.memory_space<vmem>>, vector<1x8x1x8x32xf32>
    %30 = vector.shape_cast %29 : vector<1x8x1x8x32xf32> to vector<8x8x32xf32>
    %31 = vector.shape_cast %30 : vector<8x8x32xf32> to vector<64x32xf32>
    %c1_i32 = arith.constant 1 : i32
    %32 = arith.addi %1, %c1_i32 : i32
    %c0_26 = arith.constant 0 : index
    %33 = arith.index_cast %32 : i32 to index
    %c0_27 = arith.constant 0 : index
    %c0_28 = arith.constant 0 : index
    %c0_29 = arith.constant 0 : index
    %34 = vector.load %arg2[%c0_26, %33, %c0_27, %c0_28, %c0_29] : memref<1x9x2x9x64xf32, #tpu.memory_space<vmem>>, vector<1x8x1x8x32xf32>
    %35 = vector.shape_cast %34 : vector<1x8x1x8x32xf32> to vector<8x8x32xf32>
    %36 = vector.shape_cast %35 : vector<8x8x32xf32> to vector<64x32xf32>
    %c1_i32_30 = arith.constant 1 : i32
    %37 = arith.addi %1, %c1_i32_30 : i32
    %c0_31 = arith.constant 0 : index
    %38 = arith.index_cast %37 : i32 to index
    %c0_32 = arith.constant 0 : index
    %c0_33 = arith.constant 0 : index
    %c32_34 = arith.constant 32 : index
    %39 = vector.load %arg2[%c0_31, %38, %c0_32, %c0_33, %c32_34] : memref<1x9x2x9x64xf32, #tpu.memory_space<vmem>>, vector<1x8x1x8x32xf32>
    %40 = vector.shape_cast %39 : vector<1x8x1x8x32xf32> to vector<8x8x32xf32>
    %41 = vector.shape_cast %40 : vector<8x8x32xf32> to vector<64x32xf32>
    %c1_i32_35 = arith.constant 1 : i32
    %42 = arith.addi %1, %c1_i32_35 : i32
    %c0_36 = arith.constant 0 : index
    %43 = arith.index_cast %42 : i32 to index
    %c0_37 = arith.constant 0 : index
    %c1_38 = arith.constant 1 : index
    %c0_39 = arith.constant 0 : index
    %44 = vector.load %arg2[%c0_36, %43, %c0_37, %c1_38, %c0_39] : memref<1x9x2x9x64xf32, #tpu.memory_space<vmem>>, vector<1x8x1x8x32xf32>
    %45 = vector.shape_cast %44 : vector<1x8x1x8x32xf32> to vector<8x8x32xf32>
    %46 = vector.shape_cast %45 : vector<8x8x32xf32> to vector<64x32xf32>
    %47 = tpu.concatenate %6, %11, %16, %21, %26, %31, %36, %41, %46 in 1 : vector<64x32xf32>, vector<64x32xf32>, vector<64x32xf32>, vector<64x32xf32>, vector<64x32xf32>, vector<64x32xf32>, vector<64x32xf32>, vector<64x32xf32>, vector<64x32xf32> -> vector<64x288xf32>
    %c0_40 = arith.constant 0 : index
    %c0_41 = arith.constant 0 : index
    %48 = vector.load %arg3[%c0_40, %c0_41] : memref<288x32xf32, #tpu.memory_space<vmem>>, vector<288x32xf32>
    %cst = arith.constant dense<0.000000e+00> : vector<64x32xf32>
    %49 = tpu.matmul %47, %48, %cst {dimension_numbers = #tpu.dot_dimension_numbers<[1], [0], [0], [1], [0, 0, 1, 1], [], []>} : vector<64x288xf32>, vector<288x32xf32>, vector<64x32xf32> -> vector<64x32xf32>
    %c0_42 = arith.constant 0 : index
    %c0_43 = arith.constant 0 : index
    %50 = vector.load %arg4[%c0_42, %c0_43] : memref<1x32xf32, #tpu.memory_space<vmem>>, vector<1x32xf32>
    %51 = vector.broadcast %50 : vector<1x32xf32> to vector<64x32xf32>
    %52 = arith.mulf %49, %51 : vector<64x32xf32>
    %c0_44 = arith.constant 0 : index
    %c0_45 = arith.constant 0 : index
    %53 = vector.load %arg5[%c0_44, %c0_45] : memref<1x32xf32, #tpu.memory_space<vmem>>, vector<1x32xf32>
    %54 = vector.broadcast %53 : vector<1x32xf32> to vector<64x32xf32>
    %55 = arith.addf %52, %54 : vector<64x32xf32>
    %cst_46 = arith.constant 0.000000e+00 : f32
    %56 = vector.broadcast %cst_46 : f32 to vector<64x32xf32>
    %57 = arith.maximumf %55, %56 : vector<64x32xf32>
    %58 = vector.shape_cast %57 : vector<64x32xf32> to vector<8x8x32xf32>
    %c0_47 = arith.constant 0 : index
    %c0_48 = arith.constant 0 : index
    %c0_49 = arith.constant 0 : index
    %c0_50 = arith.constant 0 : index
    %59 = vector.load %arg6[%c0_47, %c0_48, %c0_49, %c0_50] : memref<1x8x8x32xf32, #tpu.memory_space<vmem>>, vector<1x8x8x32xf32>
    %60 = vector.shape_cast %59 : vector<1x8x8x32xf32> to vector<8x8x32xf32>
    %61 = vector.shape_cast %58 : vector<8x8x32xf32> to vector<1x8x8x32xf32>
    tpu.vector_store %arg6[%c0_47, %c0_48, %c0_49, %c0_50], %61 {strides = array<i32>} : memref<1x8x8x32xf32, #tpu.memory_space<vmem>>, vector<1x8x8x32xf32>,
    return
  }
  func.func @transform_0(%arg0: i32, %arg1: i32) -> (i32, i32, i32, i32, i32) {
    %c0_i32 = arith.constant 0 : i32
    %c0_i32_0 = arith.constant 0 : i32
    %c0_i32_1 = arith.constant 0 : i32
    %c0_i32_2 = arith.constant 0 : i32
    %c0_i32_3 = arith.constant 0 : i32
    return %arg0, %c0_i32, %c0_i32_0, %c0_i32_1, %c0_i32_2 : i32, i32, i32, i32, i32
  }
  func.func @transform_1(%arg0: i32, %arg1: i32) -> (i32, i32) {
    %c0_i32 = arith.constant 0 : i32
    %c0_i32_0 = arith.constant 0 : i32
    %c0_i32_1 = arith.constant 0 : i32
    return %c0_i32, %c0_i32_0 : i32, i32
  }
  func.func @transform_2(%arg0: i32, %arg1: i32) -> (i32, i32) {
    %c0_i32 = arith.constant 0 : i32
    %c0_i32_0 = arith.constant 0 : i32
    %c0_i32_1 = arith.constant 0 : i32
    return %c0_i32, %c0_i32_0 : i32, i32
  }
  func.func @transform_3(%arg0: i32, %arg1: i32) -> (i32, i32) {
    %c0_i32 = arith.constant 0 : i32
    %c0_i32_0 = arith.constant 0 : i32
    %c0_i32_1 = arith.constant 0 : i32
    return %c0_i32, %c0_i32_0 : i32, i32
  }
  func.func @transform_4(%arg0: i32, %arg1: i32) -> (i32, i32, i32, i32) {
    %c0_i32 = arith.constant 0 : i32
    %c0_i32_0 = arith.constant 0 : i32
    %c0_i32_1 = arith.constant 0 : i32
    return %arg0, %arg1, %c0_i32, %c0_i32_0 : i32, i32, i32, i32
  }
}

</mosaic_0001>

<llo_original>
// kernel: downsample_conv_forward.1
$region0: #{downsample_conv_forward.1}
  #allocation0 [shape = 'u32[]', space=smem, size = 0x4, offset = 0x4, fixed_abs, tag = 'smem constant byte address 0x4 - core index']
  #allocation1 [shape = 'u32[72,128]{1,0:T(1,128)}', space=vmem, size = 0x9000, scoped, tag = 'internal scratch']
  %s0 = inlined_call_operand.vmem [shape: f32[2,9,2,9,64], index: 0, kind: input, shape index: {}]
  %s1 = inlined_call_operand.vmem [shape: f32[288,32], index: 1, kind: input, shape index: {}]
  %s2 = inlined_call_operand.vmem [shape: f32[1,32], index: 2, kind: input, shape index: {}]
  %s3 = inlined_call_operand.vmem [shape: f32[1,32], index: 3, kind: input, shape index: {}]
  %s4 = inlined_call_operand.hbm [shape: f32[2,8,8,32], index: 4, kind: output, shape index: {}]
  %s5 = sld [smem:[#allocation0]]
  $region49: #{downsample_conv_forward.1} parent=0
    _
  %s7 = ssub.s32 1, %s5
  %s8 = scalar_select 0, %s7, %s5
  $region1: #{downsample_conv_forward.1} parent=0
    #allocation2 [shape = 'u8[65536]{0}', space=vmem, size = 0x10000, scoped, tag = 'output window, operand 0']
    #allocation3 [shape = 's32[2]{0}', space=sflag, size = 0x8, scoped, tag = 'scoped memory for downsample_conv_forward.1']
    %9 = vsyncpa [#allocation3], 0
    %s10 = scalar_lea.sflag [#allocation3], 1
    %11 = vsyncpa %s10, 0
    loop: start=0, step=1, limit=4
    $region2: #{downsample_conv_forward.1} parent=1 // loop_pre_header
      _
    $region3: #{downsample_conv_forward.1} parent=1 // loop_header
      %s13 = sphi 0, %s17
      %p14 = scmp.ge.s32.totalorder %s13, 4
      %s20 = sphi 0, %s32
      %s21 = sphi 0, %s28
      %s22 = sphi 0, %s20
      %s23 = sphi 0, %s21
      %s24 = sphi 0, %s22
      %s25 = sphi 0, %s23
      %s35 = sphi 0, %s37
      %s38 = sphi 0, %s35
      %s39 = sphi 0, %s38
      %s55 = sphi 0, %s39
      %s59 = sphi 0, %s59
      %s61 = sphi 0, %s59
      %s62 = sphi 0, %s61
      %s76 = sphi 0, %s62
      %s80 = sphi 0, %s80
      %s82 = sphi 0, %s80
      %s83 = sphi 0, %s82
      %s97 = sphi 0, %s83
      %s101 = sphi 0, %s101
      %s103 = sphi 0, %s101
      %s104 = sphi 0, %s103
      %s118 = sphi 0, %s104
      %s126 = sphi 0, %s128
      %s129 = sphi 0, %s126
      %s130 = sphi 0, %s129
      %s146 = sphi 0, %s130
    $region4: #{downsample_conv_forward.1} parent=1 // loop_header_branch
      %16 = sbr.rel (%p14) target = $region8
    $region5: #{downsample_conv_forward.1} parent=1 // loop_body
      %s18 = ssub.s32 %s13, 1
      %s19 = ssub.s32 %s13, 2
      %s26 = sadd.s32 1, %s21
      %p27 = scmp.ge.s32.totalorder %s26, 1
      %s28 = scalar_select %p27, 0, %s26
      %s29 = sadd.s32 1, %s20
      %s30 = scalar_select %p27, %s29, %s20
      %p31 = scmp.ge.s32.totalorder %s30, 2
      %s32 = scalar_select %p31, 0, %s30
      %s33 = ssub.s32 %s20, %s32
      %p34 = scmp.eq.s32.totalorder %s33, 0
      %s36 = sadd.s32 %s35, 1
      %s37 = scalar_select %p34, %s35, %s36
      %p40 = pneg %p34
      %p41 = scmp.eq.s32.totalorder %s13, 1
      %p42 = por %p40, %p41
      %p43 = scmp.ne.s32.totalorder %s35, %s38
      %p44 = scmp.eq.s32.totalorder %s13, 0
      %p45 = por %p43, %p44
      %p46 = scmp.ne.s32.totalorder %s35, %s38
      %p47 = scmp.eq.s32.totalorder %s18, 1
      %p48 = por %p46, %p47
      %p49 = scmp.ne.s32.totalorder %s38, %s39
      %p50 = scmp.eq.s32.totalorder %s18, 0
      %p51 = por %p49, %p50
      %p52 = scmp.ne.s32.totalorder %s38, %s39
      %p53 = scmp.eq.s32.totalorder %s19, 1
      %p54 = por %p52, %p53
      %p56 = scmp.ne.s32.totalorder %s39, %s55
      %p57 = scmp.eq.s32.totalorder %s19, 0
      %p58 = por %p56, %p57
      %s60 = sadd.s32 %s59, 1
      %p63 = scmp.eq.s32.totalorder %s13, 1
      %p64 = scmp.ne.s32.totalorder %s59, %s61
      %p65 = scmp.eq.s32.totalorder %s13, 0
      %p66 = por %p64, %p65
      %p67 = scmp.ne.s32.totalorder %s59, %s61
      %p68 = scmp.eq.s32.totalorder %s18, 1
      %p69 = por %p67, %p68
      %p70 = scmp.ne.s32.totalorder %s61, %s62
      %p71 = scmp.eq.s32.totalorder %s18, 0
      %p72 = por %p70, %p71
      %p73 = scmp.ne.s32.totalorder %s61, %s62
      %p74 = scmp.eq.s32.totalorder %s19, 1
      %p75 = por %p73, %p74
      %p77 = scmp.ne.s32.totalorder %s62, %s76
      %p78 = scmp.eq.s32.totalorder %s19, 0
      %p79 = por %p77, %p78
      %s81 = sadd.s32 %s80, 1
      %p84 = scmp.eq.s32.totalorder %s13, 1
      %p85 = scmp.ne.s32.totalorder %s80, %s82
      %p86 = scmp.eq.s32.totalorder %s13, 0
      %p87 = por %p85, %p86
      %p88 = scmp.ne.s32.totalorder %s80, %s82
      %p89 = scmp.eq.s32.totalorder %s18, 1
      %p90 = por %p88, %p89
      %p91 = scmp.ne.s32.totalorder %s82, %s83
      %p92 = scmp.eq.s32.totalorder %s18, 0
      %p93 = por %p91, %p92
      %p94 = scmp.ne.s32.totalorder %s82, %s83
      %p95 = scmp.eq.s32.totalorder %s19, 1
      %p96 = por %p94, %p95
      %p98 = scmp.ne.s32.totalorder %s83, %s97
      %p99 = scmp.eq.s32.totalorder %s19, 0
      %p100 = por %p98, %p99
      %s102 = sadd.s32 %s101, 1
      %p105 = scmp.eq.s32.totalorder %s13, 1
      %p106 = scmp.ne.s32.totalorder %s101, %s103
      %p107 = scmp.eq.s32.totalorder %s13, 0
      %p108 = por %p106, %p107
      %p109 = scmp.ne.s32.totalorder %s101, %s103
      %p110 = scmp.eq.s32.totalorder %s18, 1
      %p111 = por %p109, %p110
      %p112 = scmp.ne.s32.totalorder %s103, %s104
      %p113 = scmp.eq.s32.totalorder %s18, 0
      %p114 = por %p112, %p113
      %p115 = scmp.ne.s32.totalorder %s103, %s104
      %p116 = scmp.eq.s32.totalorder %s19, 1
      %p117 = por %p115, %p116
      %p119 = scmp.ne.s32.totalorder %s104, %s118
      %p120 = scmp.eq.s32.totalorder %s19, 0
      %p121 = por %p119, %p120
      %s122 = ssub.s32 %s20, %s32
      %s123 = ssub.s32 %s21, %s28
      %s124 = sor.u32 %s122, %s123
      %p125 = scmp.eq.s32.totalorder %s124, 0
      %s127 = sadd.s32 %s126, 1
      %s128 = scalar_select %p125, %s126, %s127
      %p131 = pneg %p125
      %p132 = scmp.eq.s32.totalorder %s13, 1
      %p133 = por %p131, %p132
      %p134 = scmp.ne.s32.totalorder %s126, %s129
      %p135 = scmp.eq.s32.totalorder %s13, 0
      %p136 = por %p134, %p135
      %p137 = scmp.ne.s32.totalorder %s126, %s129
      %p138 = scmp.eq.s32.totalorder %s18, 1
      %p139 = por %p137, %p138
      %p140 = scmp.ne.s32.totalorder %s129, %s130
      %p141 = scmp.eq.s32.totalorder %s18, 0
      %p142 = por %p140, %p141
      %p143 = scmp.ne.s32.totalorder %s129, %s130
      %p144 = scmp.eq.s32.totalorder %s19, 1
      %p145 = por %p143, %p144
      %p147 = scmp.ne.s32.totalorder %s130, %s146
      %p148 = scmp.eq.s32.totalorder %s19, 0
      %p149 = por %p147, %p148
      %p150 = scmp.le.s32.totalorder 1, %s13
      %p151 = scmp.lt.s32.totalorder %s13, 3
      %p152 = pnand %p150, %p151
      %p153 = pneg %p152
      // Predicated region
      $region9: #{downsample_conv_forward.1} parent=5 // pred_check
        _
      $region10: #{downsample_conv_forward.1} parent=5 // pred_check_branch
        %155 = sbr.rel (%p152) target = $region12
      $region11: #{downsample_conv_forward.1} parent=5 // pred_region
        %s156 = ssub.s32 %s13, 1
        // Predicated region
        $region13: #{downsample_conv_forward.1} parent=11 // pred_check
          %p157 = pneg %p72
        $region14: #{downsample_conv_forward.1} parent=11 // pred_check_branch
          %159 = sbr.rel (%p157) target = $region16
        $region15: #{downsample_conv_forward.1} parent=11 // pred_region
          _
        $region16: #{downsample_conv_forward.1} parent=11 // pred_fallthru
          _
        // Predicated region
        $region17: #{downsample_conv_forward.1} parent=11 // pred_check
          %p160 = pneg %p93
        $region18: #{downsample_conv_forward.1} parent=11 // pred_check_branch
          %162 = sbr.rel (%p160) target = $region20
        $region19: #{downsample_conv_forward.1} parent=11 // pred_region
          _
        $region20: #{downsample_conv_forward.1} parent=11 // pred_fallthru
          _
        // Predicated region
        $region21: #{downsample_conv_forward.1} parent=11 // pred_check
          %p163 = pneg %p114
        $region22: #{downsample_conv_forward.1} parent=11 // pred_check_branch
          %165 = sbr.rel (%p163) target = $region24
        $region23: #{downsample_conv_forward.1} parent=11 // pred_region
          _
        $region24: #{downsample_conv_forward.1} parent=11 // pred_fallthru
          _
      $region12: #{downsample_conv_forward.1} parent=5 // pred_fallthru
        _
      %p166 = scmp.lt.s32.totalorder %s13, 2
      // Predicated region
      $region25: #{downsample_conv_forward.1} parent=5 // pred_check
        %p167 = pneg %p166
      $region26: #{downsample_conv_forward.1} parent=5 // pred_check_branch
        %169 = sbr.rel (%p167) target = $region28
      $region27: #{downsample_conv_forward.1} parent=5 // pred_region
        // Predicated region
        $region29: #{downsample_conv_forward.1} parent=27 // pred_check
          %p170 = pneg %p45
        $region30: #{downsample_conv_forward.1} parent=27 // pred_check_branch
          %172 = sbr.rel (%p170) target = $region32
        $region31: #{downsample_conv_forward.1} parent=27 // pred_region
          %p173 = scmp.lt.s32.totalorder %s20, 1
          %s174 = scalar_select %p173, %s20, 1
          %s175 = smul.addr %s174, 36
          %s176 = smul.addr %s175, 8
          %s177 = scalar_lea.vmem %s0, %s176
        $region32: #{downsample_conv_forward.1} parent=27 // pred_fallthru
          _
      $region28: #{downsample_conv_forward.1} parent=5 // pred_fallthru
        _
      %p178 = scmp.le.s32.totalorder 1, %s13
      %p179 = scmp.lt.s32.totalorder %s13, 3
      %p180 = pnand %p178, %p179
      %p181 = pneg %p180
      // Predicated region
      $region33: #{downsample_conv_forward.1} parent=5 // pred_check
        _
      $region34: #{downsample_conv_forward.1} parent=5 // pred_check_branch
        %183 = sbr.rel (%p180) target = $region36
      $region35: #{downsample_conv_forward.1} parent=5 // pred_region
        %s184 = ssub.s32 %s13, 1
        %p185 = scmp.lt.s32.totalorder %s22, 1
        %s186 = scalar_select %p185, %s22, 1
        %s187 = smul.addr %s186, 36
        %s188 = smul.addr %s187, 8
        %s189 = scalar_lea.vmem %s0, %s188
        %p190 = pneg %p51
        %p191 = pneg %p48
        %p192 = pneg %p72
        %p193 = pneg %p69
        %p194 = pneg %p93
        %p195 = pneg %p90
        %p196 = pneg %p114
        %p197 = pneg %p111
        %p198 = pneg %p142
        %p199 = pneg %p139
        %s200 = sand.u32 %s129, 1
        %s201 = scalar_lea.sflag [#allocation3], %s200
        %s202 = sand.u32 %s129, 1
        %s203 = smul.addr %s202, 64
        %s204 = scalar_lea.vmem [#allocation2], %s203
        %p205 = scmp.lt.s32.totalorder %s22, 1
        %s206 = scalar_select %p205, %s22, 1
        %s207 = smul.addr %s206, 36
        %s208 = smul.addr %s207, 8
        %s209 = scalar_lea.vmem %s0, %s208
        %s210 = smul.u32 8, %s23
        %s211 = smul.u32 %s23, 8
        %s212 = smul.u32 %s211, 32
        %s213 = scalar_lea.vmem %s209, %s212
        %v214 = vld [vmem:[%s213] sm:$0xff]
        %v215 = vld [vmem:[%s213 + $0x20] sm:$0xff]
        %v216 = vld [vmem:[%s213 + $0x40] sm:$0xff]
        %v217 = vld [vmem:[%s213 + $0x60] sm:$0xff]
        %v218 = vld [vmem:[%s213 + $0x80] sm:$0xff]
        %v219 = vld [vmem:[%s213 + $0xa0] sm:$0xff]
        %v220 = vld [vmem:[%s213 + $0xc0] sm:$0xff]
        %v221 = vld [vmem:[%s213 + $0xe0] sm:$0xff]
        %v222 = vld [vmem:[%s213 + $0x1] sm:$0xff]
        %v223 = vld [vmem:[%s213 + $0x21] sm:$0xff]
        %v224 = vld [vmem:[%s213 + $0x41] sm:$0xff]
        %v225 = vld [vmem:[%s213 + $0x61] sm:$0xff]
        %v226 = vld [vmem:[%s213 + $0x81] sm:$0xff]
        %v227 = vld [vmem:[%s213 + $0xa1] sm:$0xff]
        %v228 = vld [vmem:[%s213 + $0xc1] sm:$0xff]
        %v229 = vld [vmem:[%s213 + $0xe1] sm:$0xff]
        %s230 = sadd.s32 16, %s212
        %s231 = scalar_lea.vmem %s209, %s230
        %v232 = vld [vmem:[%s231] sm:$0xff]
        %v233 = vld [vmem:[%s231 + $0x20] sm:$0xff]
        %v234 = vld [vmem:[%s231 + $0x40] sm:$0xff]
        %v235 = vld [vmem:[%s231 + $0x60] sm:$0xff]
        %v236 = vld [vmem:[%s231 + $0x80] sm:$0xff]
        %v237 = vld [vmem:[%s231 + $0xa0] sm:$0xff]
        %v238 = vld [vmem:[%s231 + $0xc0] sm:$0xff]
        %v239 = vld [vmem:[%s231 + $0xe0] sm:$0xff]
        %v240 = vld [vmem:[%s231 + $0x1] sm:$0xff]
        %v241 = vld [vmem:[%s231 + $0x21] sm:$0xff]
        %v242 = vld [vmem:[%s231 + $0x41] sm:$0xff]
        %v243 = vld [vmem:[%s231 + $0x61] sm:$0xff]
        %v244 = vld [vmem:[%s231 + $0x81] sm:$0xff]
        %v245 = vld [vmem:[%s231 + $0xa1] sm:$0xff]
        %v246 = vld [vmem:[%s231 + $0xc1] sm:$0xff]
        %v247 = vld [vmem:[%s231 + $0xe1] sm:$0xff]
        %s248 = sadd.s32 %s211, 1
        %s249 = smul.u32 %s248, 32
        %s250 = scalar_lea.vmem %s209, %s249
        %v251 = vld [vmem:[%s250] sm:$0xff]
        %v252 = vld [vmem:[%s250 + $0x20] sm:$0xff]
        %v253 = vld [vmem:[%s250 + $0x40] sm:$0xff]
        %v254 = vld [vmem:[%s250 + $0x60] sm:$0xff]
        %v255 = vld [vmem:[%s250 + $0x80] sm:$0xff]
        %v256 = vld [vmem:[%s250 + $0xa0] sm:$0xff]
        %v257 = vld [vmem:[%s250 + $0xc0] sm:$0xff]
        %v258 = vld [vmem:[%s250 + $0xe0] sm:$0xff]
        %v259 = vld [vmem:[%s250 + $0x1] sm:$0xff]
        %v260 = vld [vmem:[%s250 + $0x21] sm:$0xff]
        %v261 = vld [vmem:[%s250 + $0x41] sm:$0xff]
        %v262 = vld [vmem:[%s250 + $0x61] sm:$0xff]
        %v263 = vld [vmem:[%s250 + $0x81] sm:$0xff]
        %v264 = vld [vmem:[%s250 + $0xa1] sm:$0xff]
        %v265 = vld [vmem:[%s250 + $0xc1] sm:$0xff]
        %v266 = vld [vmem:[%s250 + $0xe1] sm:$0xff]
        %275 = vrot.lane.b32.xlu0 %v222, 64
        %v276 = vpop.permute.xlu0 %275
        %277 = vrot.lane.b32.xlu0 %v223, 64
        %v278 = vpop.permute.xlu0 %277
        %279 = vrot.lane.b32.xlu0 %v224, 64
        %v280 = vpop.permute.xlu0 %279
        %281 = vrot.lane.b32.xlu0 %v225, 64
        %v282 = vpop.permute.xlu0 %281
        %283 = vrot.lane.b32.xlu0 %v226, 64
        %v284 = vpop.permute.xlu0 %283
        %285 = vrot.lane.b32.xlu0 %v227, 64
        %v286 = vpop.permute.xlu0 %285
        %287 = vrot.lane.b32.xlu0 %v228, 64
        %v288 = vpop.permute.xlu0 %287
        %289 = vrot.lane.b32.xlu0 %v229, 64
        %v290 = vpop.permute.xlu0 %289
        %307 = vrot.lane.b32.xlu0 %v232, 96
        %v308 = vpop.permute.xlu0 %307
        %309 = vrot.lane.b32.xlu0 %v233, 96
        %v310 = vpop.permute.xlu0 %309
        %311 = vrot.lane.b32.xlu0 %v234, 96
        %v312 = vpop.permute.xlu0 %311
        %313 = vrot.lane.b32.xlu0 %v235, 96
        %v314 = vpop.permute.xlu0 %313
        %315 = vrot.lane.b32.xlu0 %v236, 96
        %v316 = vpop.permute.xlu0 %315
        %317 = vrot.lane.b32.xlu0 %v237, 96
        %v318 = vpop.permute.xlu0 %317
        %319 = vrot.lane.b32.xlu0 %v238, 96
        %v320 = vpop.permute.xlu0 %319
        %321 = vrot.lane.b32.xlu0 %v239, 96
        %v322 = vpop.permute.xlu0 %321
        %339 = vrot.lane.b32.xlu0 %v240, 32
        %v340 = vpop.permute.xlu0 %339
        %341 = vrot.lane.b32.xlu0 %v241, 32
        %v342 = vpop.permute.xlu0 %341
        %343 = vrot.lane.b32.xlu0 %v242, 32
        %v344 = vpop.permute.xlu0 %343
        %345 = vrot.lane.b32.xlu0 %v243, 32
        %v346 = vpop.permute.xlu0 %345
        %347 = vrot.lane.b32.xlu0 %v244, 32
        %v348 = vpop.permute.xlu0 %347
        %349 = vrot.lane.b32.xlu0 %v245, 32
        %v350 = vpop.permute.xlu0 %349
        %351 = vrot.lane.b32.xlu0 %v246, 32
        %v352 = vpop.permute.xlu0 %351
        %353 = vrot.lane.b32.xlu0 %v247, 32
        %v354 = vpop.permute.xlu0 %353
        %371 = vrot.lane.b32.xlu0 %v251, 64
        %v372 = vpop.permute.xlu0 %371
        %373 = vrot.lane.b32.xlu0 %v252, 64
        %v374 = vpop.permute.xlu0 %373
        %375 = vrot.lane.b32.xlu0 %v253, 64
        %v376 = vpop.permute.xlu0 %375
        %377 = vrot.lane.b32.xlu0 %v254, 64
        %v378 = vpop.permute.xlu0 %377
        %379 = vrot.lane.b32.xlu0 %v255, 64
        %v380 = vpop.permute.xlu0 %379
        %381 = vrot.lane.b32.xlu0 %v256, 64
        %v382 = vpop.permute.xlu0 %381
        %383 = vrot.lane.b32.xlu0 %v257, 64
        %v384 = vpop.permute.xlu0 %383
        %385 = vrot.lane.b32.xlu0 %v258, 64
        %v386 = vpop.permute.xlu0 %385
        %vm395 = vcmask 261120
        %vm396 = vcmask 523264
        %v397 = vsel %vm396, %v214, %v276
        %v398 = vsel %vm396, %v215, %v278
        %v399 = vsel %vm396, %v216, %v280
        %v400 = vsel %vm396, %v217, %v282
        %v401 = vsel %vm396, %v218, %v284
        %v402 = vsel %vm396, %v219, %v286
        %v403 = vsel %vm396, %v220, %v288
        %v404 = vsel %vm396, %v221, %v290
        %vm405 = vcmask 785408
        %v406 = vsel %vm405, %v397, %v308
        %v407 = vsel %vm405, %v398, %v310
        %v408 = vsel %vm405, %v399, %v312
        %v409 = vsel %vm405, %v400, %v314
        %v410 = vsel %vm405, %v401, %v316
        %v411 = vsel %vm405, %v402, %v318
        %v412 = vsel %vm405, %v403, %v320
        %v413 = vsel %vm405, %v404, %v322
        %v414 = vsel %vm395, %v308, %v340
        %v415 = vsel %vm395, %v310, %v342
        %v416 = vsel %vm395, %v312, %v344
        %v417 = vsel %vm395, %v314, %v346
        %v418 = vsel %vm395, %v316, %v348
        %v419 = vsel %vm395, %v318, %v350
        %v420 = vsel %vm395, %v320, %v352
        %v421 = vsel %vm395, %v322, %v354
        %v422 = vsel %vm396, %v414, %v372
        %v423 = vsel %vm396, %v415, %v374
        %v424 = vsel %vm396, %v416, %v376
        %v425 = vsel %vm396, %v417, %v378
        %v426 = vsel %vm396, %v418, %v380
        %v427 = vsel %vm396, %v419, %v382
        %v428 = vsel %vm396, %v420, %v384
        %v429 = vsel %vm396, %v421, %v386
        %v430 = vsel %vm405, %v422, %v372
        %v431 = vsel %vm405, %v423, %v374
        %v432 = vsel %vm405, %v424, %v376
        %v433 = vsel %vm405, %v425, %v378
        %v434 = vsel %vm405, %v426, %v380
        %v435 = vsel %vm405, %v427, %v382
        %v436 = vsel %vm405, %v428, %v384
        %v437 = vsel %vm405, %v429, %v386
        %v438 = vld [vmem:[%s1] sm:$0xff]
        %v439 = vld [vmem:[%s1 + $0x8] sm:$0xff]
        %v440 = vld [vmem:[%s1 + $0x10] sm:$0xff]
        %v441 = vld [vmem:[%s1 + $0x18] sm:$0xff]
        %v442 = vld [vmem:[%s1 + $0x20] sm:$0xff]
        %v443 = vld [vmem:[%s1 + $0x28] sm:$0xff]
        %v444 = vld [vmem:[%s1 + $0x30] sm:$0xff]
        %v445 = vld [vmem:[%s1 + $0x38] sm:$0xff]
        %v446 = vld [vmem:[%s1 + $0x40] sm:$0xff]
        %v447 = vld [vmem:[%s1 + $0x48] sm:$0xff]
        %v448 = vld [vmem:[%s1 + $0x50] sm:$0xff]
        %v449 = vld [vmem:[%s1 + $0x58] sm:$0xff]
        %v450 = vld [vmem:[%s1 + $0x60] sm:$0xff]
        %v451 = vld [vmem:[%s1 + $0x68] sm:$0xff]
        %v452 = vld [vmem:[%s1 + $0x70] sm:$0xff]
        %v453 = vld [vmem:[%s1 + $0x78] sm:$0xff]
        %v454 = vld [vmem:[%s1 + $0x80] sm:$0xff]
        %v455 = vld [vmem:[%s1 + $0x88] sm:$0xff]
        %v456 = vld [vmem:[%s1 + $0x90] sm:$0xff]
        %v457 = vld [vmem:[%s1 + $0x98] sm:$0xff]
        %v458 = vld [vmem:[%s1 + $0xa0] sm:$0xff]
        %v459 = vld [vmem:[%s1 + $0xa8] sm:$0xff]
        %v460 = vld [vmem:[%s1 + $0xb0] sm:$0xff]
        %v461 = vld [vmem:[%s1 + $0xb8] sm:$0xff]
        %v462 = vld [vmem:[%s1 + $0xc0] sm:$0xff]
        %v463 = vld [vmem:[%s1 + $0xc8] sm:$0xff]
        %v464 = vld [vmem:[%s1 + $0xd0] sm:$0xff]
        %v465 = vld [vmem:[%s1 + $0xd8] sm:$0xff]
        %v466 = vld [vmem:[%s1 + $0xe0] sm:$0xff]
        %v467 = vld [vmem:[%s1 + $0xe8] sm:$0xff]
        %v468 = vld [vmem:[%s1 + $0xf0] sm:$0xff]
        %v469 = vld [vmem:[%s1 + $0xf8] sm:$0xff]
        %v470 = vld [vmem:[%s1 + $0x100] sm:$0xff]
        %v471 = vld [vmem:[%s1 + $0x108] sm:$0xff]
        %v472 = vld [vmem:[%s1 + $0x110] sm:$0xff]
        %v473 = vld [vmem:[%s1 + $0x118] sm:$0xff]
        %v475 = vsel %vm395, %v259, 0
        %v478 = vsel %vm395, %v260, 0
        %v481 = vsel %vm395, %v261, 0
        %v484 = vsel %vm395, %v262, 0
        %v487 = vsel %vm395, %v263, 0
        %v490 = vsel %vm395, %v264, 0
        %v493 = vsel %vm395, %v265, 0
        %v496 = vsel %vm395, %v266, 0
        %498 = vmatpush.msra.mxu0 %v453
        %499 = vmatpush.msra.mxu0 %v452
        %500 = vmatpush.msra.mxu0 %v451
        %501 = vmatpush.msra.mxu0 %v450
        %502 = vmatpush.msra.mxu0 %v449
        %503 = vmatpush.msra.mxu0 %v448
        %504 = vmatpush.msra.mxu0 %v447
        %505 = vmatpush.msra.mxu0 %v446
        %506 = vmatpush.msra.mxu0 %v445
        %507 = vmatpush.msra.mxu0 %v444
        %508 = vmatpush.msra.mxu0 %v443
        %509 = vmatpush.msra.mxu0 %v442
        %510 = vmatpush.msra.mxu0 %v441
        %511 = vmatpush.msra.mxu0 %v440
        %512 = vmatpush.msra.mxu0 %v439
        %513 = vmatpush.msra.mxu0 %v438
        %514 = vmatmul.f32.gmra.mxu0 %v406
        %v515 = vpop.f32.mrf.mxu0
        %v516 = vadd.f32 0.0, %v515
        %517 = vmatmul.f32.gmra.mxu0 %v407
        %v518 = vpop.f32.mrf.mxu0
        %v519 = vadd.f32 0.0, %v518
        %520 = vmatmul.f32.gmra.mxu0 %v408
        %v521 = vpop.f32.mrf.mxu0
        %v522 = vadd.f32 0.0, %v521
        %523 = vmatmul.f32.gmra.mxu0 %v409
        %v524 = vpop.f32.mrf.mxu0
        %v525 = vadd.f32 0.0, %v524
        %526 = vmatmul.f32.gmra.mxu0 %v410
        %v527 = vpop.f32.mrf.mxu0
        %v528 = vadd.f32 0.0, %v527
        %529 = vmatmul.f32.gmra.mxu0 %v411
        %v530 = vpop.f32.mrf.mxu0
        %v531 = vadd.f32 0.0, %v530
        %532 = vmatmul.f32.gmra.mxu0 %v412
        %v533 = vpop.f32.mrf.mxu0
        %v534 = vadd.f32 0.0, %v533
        %535 = vmatmul.f32.gmra.mxu0 %v413
        %v536 = vpop.f32.mrf.mxu0
        %v537 = vadd.f32 0.0, %v536
        %538 = vdwg.mxu0
        %539 = vmatpush.msra.mxu0 %v469
        %540 = vmatpush.msra.mxu0 %v468
        %541 = vmatpush.msra.mxu0 %v467
        %542 = vmatpush.msra.mxu0 %v466
        %543 = vmatpush.msra.mxu0 %v465
        %544 = vmatpush.msra.mxu0 %v464
        %545 = vmatpush.msra.mxu0 %v463
        %546 = vmatpush.msra.mxu0 %v462
        %547 = vmatpush.msra.mxu0 %v461
        %548 = vmatpush.msra.mxu0 %v460
        %549 = vmatpush.msra.mxu0 %v459
        %550 = vmatpush.msra.mxu0 %v458
        %551 = vmatpush.msra.mxu0 %v457
        %552 = vmatpush.msra.mxu0 %v456
        %553 = vmatpush.msra.mxu0 %v455
        %554 = vmatpush.msra.mxu0 %v454
        %555 = vmatmul.f32.gmra.mxu0 %v430
        %v556 = vpop.f32.mrf.mxu0
        %v557 = vadd.f32 %v516, %v556
        %558 = vmatmul.f32.gmra.mxu0 %v431
        %v559 = vpop.f32.mrf.mxu0
        %v560 = vadd.f32 %v519, %v559
        %561 = vmatmul.f32.gmra.mxu0 %v432
        %v562 = vpop.f32.mrf.mxu0
        %v563 = vadd.f32 %v522, %v562
        %564 = vmatmul.f32.gmra.mxu0 %v433
        %v565 = vpop.f32.mrf.mxu0
        %v566 = vadd.f32 %v525, %v565
        %567 = vmatmul.f32.gmra.mxu0 %v434
        %v568 = vpop.f32.mrf.mxu0
        %v569 = vadd.f32 %v528, %v568
        %570 = vmatmul.f32.gmra.mxu0 %v435
        %v571 = vpop.f32.mrf.mxu0
        %v572 = vadd.f32 %v531, %v571
        %573 = vmatmul.f32.gmra.mxu0 %v436
        %v574 = vpop.f32.mrf.mxu0
        %v575 = vadd.f32 %v534, %v574
        %576 = vmatmul.f32.gmra.mxu0 %v437
        %v577 = vpop.f32.mrf.mxu0
        %v578 = vadd.f32 %v537, %v577
        %579 = vdwg.mxu0
        %580 = vmatpush.msra.mxu0 0.0
        %581 = vmatpush.msra.mxu0 0.0
        %582 = vmatpush.msra.mxu0 0.0
        %583 = vmatpush.msra.mxu0 0.0
        %584 = vmatpush.msra.mxu0 0.0
        %585 = vmatpush.msra.mxu0 0.0
        %586 = vmatpush.msra.mxu0 0.0
        %587 = vmatpush.msra.mxu0 0.0
        %588 = vmatpush.msra.mxu0 0.0
        %589 = vmatpush.msra.mxu0 0.0
        %590 = vmatpush.msra.mxu0 0.0
        %591 = vmatpush.msra.mxu0 0.0
        %592 = vmatpush.msra.mxu0 %v473
        %593 = vmatpush.msra.mxu0 %v472
        %594 = vmatpush.msra.mxu0 %v471
        %595 = vmatpush.msra.mxu0 %v470
        %596 = vmatmul.f32.gmra.mxu0 %v475
        %v597 = vpop.f32.mrf.mxu0
        %v598 = vadd.f32 %v557, %v597
        %599 = vmatmul.f32.gmra.mxu0 %v478
        %v600 = vpop.f32.mrf.mxu0
        %v601 = vadd.f32 %v560, %v600
        %602 = vmatmul.f32.gmra.mxu0 %v481
        %v603 = vpop.f32.mrf.mxu0
        %v604 = vadd.f32 %v563, %v603
        %605 = vmatmul.f32.gmra.mxu0 %v484
        %v606 = vpop.f32.mrf.mxu0
        %v607 = vadd.f32 %v566, %v606
        %608 = vmatmul.f32.gmra.mxu0 %v487
        %v609 = vpop.f32.mrf.mxu0
        %v610 = vadd.f32 %v569, %v609
        %611 = vmatmul.f32.gmra.mxu0 %v490
        %v612 = vpop.f32.mrf.mxu0
        %v613 = vadd.f32 %v572, %v612
        %614 = vmatmul.f32.gmra.mxu0 %v493
        %v615 = vpop.f32.mrf.mxu0
        %v616 = vadd.f32 %v575, %v615
        %617 = vmatmul.f32.gmra.mxu0 %v496
        %v618 = vpop.f32.mrf.mxu0
        %v619 = vadd.f32 %v578, %v618
        %620 = vdwg.mxu0
        %v621 = vld [vmem:[%s2] sm:$0x1]
        %v623 = vperm.slane %v621, 0
        %v625 = vmul.f32 %v598, %v623
        %v626 = vmul.f32 %v601, %v623
        %v627 = vmul.f32 %v604, %v623
        %v628 = vmul.f32 %v607, %v623
        %v629 = vmul.f32 %v610, %v623
        %v630 = vmul.f32 %v613, %v623
        %v631 = vmul.f32 %v616, %v623
        %v632 = vmul.f32 %v619, %v623
        %v633 = vld [vmem:[%s3] sm:$0x1]
        %v635 = vperm.slane %v633, 0
        %v637 = vadd.f32 %v625, %v635
        %v638 = vadd.f32 %v626, %v635
        %v639 = vadd.f32 %v627, %v635
        %v640 = vadd.f32 %v628, %v635
        %v641 = vadd.f32 %v629, %v635
        %v642 = vadd.f32 %v630, %v635
        %v643 = vadd.f32 %v631, %v635
        %v644 = vadd.f32 %v632, %v635
        %v645 = vmax.f32 %v637, 0.0
        %v646 = vmax.f32 %v638, 0.0
        %v647 = vmax.f32 %v639, 0.0
        %v648 = vmax.f32 %v640, 0.0
        %v649 = vmax.f32 %v641, 0.0
        %v650 = vmax.f32 %v642, 0.0
        %v651 = vmax.f32 %v643, 0.0
        %v652 = vmax.f32 %v644, 0.0
        %653 = vst.msk [vmem:[%s204] sm:$0xff] %vm395, %v645
        %654 = vst.msk [vmem:[%s204 + $0x8] sm:$0xff] %vm395, %v646
        %655 = vst.msk [vmem:[%s204 + $0x10] sm:$0xff] %vm395, %v647
        %656 = vst.msk [vmem:[%s204 + $0x18] sm:$0xff] %vm395, %v648
        %657 = vst.msk [vmem:[%s204 + $0x20] sm:$0xff] %vm395, %v649
        %658 = vst.msk [vmem:[%s204 + $0x28] sm:$0xff] %vm395, %v650
        %659 = vst.msk [vmem:[%s204 + $0x30] sm:$0xff] %vm395, %v651
        %660 = vst.msk [vmem:[%s204 + $0x38] sm:$0xff] %vm395, %v652
        %s661 = sand.u32 %s129, 1
        %s662 = scalar_lea.sflag [#allocation3], %s661
        %s663 = sand.u32 %s129, 1
        %s664 = smul.addr %s663, 64
        %s665 = scalar_lea.vmem [#allocation2], %s664
        // Predicated region
        $region37: #{downsample_conv_forward.1} parent=35 // pred_check
          %p666 = pneg %p139
        $region38: #{downsample_conv_forward.1} parent=35 // pred_check_branch
          %668 = sbr.rel (%p666) target = $region40
        $region39: #{downsample_conv_forward.1} parent=35 // pred_region
          %s669 = smul.u32 8, %s23
          %671 = vsyncadd %s662, 0
          %s672 = smul.addr %s22, 8
          %s673 = sadd.s32 %s669, %s672
          %s674 = smul.addr %s673, 8
          %s675 = scalar_lea.hbm %s4, %s674
          %s676 = sshll.u32 %s665, 4
          %s677 = int_to_ptr.vmem [resolvable:$true] %s676
          %s678 = sshll.u32 %s675, 4
          %s679 = int_to_ptr.hbm [resolvable:$true] %s678
          %684 = dma.vmem_to_hbm [thread:$0]  %s677, 1024, %s679, %s662, 128, 128, 8
        $region40: #{downsample_conv_forward.1} parent=35 // pred_fallthru
          _
      $region36: #{downsample_conv_forward.1} parent=5 // pred_fallthru
        _
      %p685 = scmp.le.s32.totalorder 2, %s13
      // Predicated region
      $region41: #{downsample_conv_forward.1} parent=5 // pred_check
        %p686 = pneg %p685
      $region42: #{downsample_conv_forward.1} parent=5 // pred_check_branch
        %688 = sbr.rel (%p686) target = $region44
      $region43: #{downsample_conv_forward.1} parent=5 // pred_region
        %s689 = ssub.s32 %s13, 2
        // Predicated region
        $region45: #{downsample_conv_forward.1} parent=43 // pred_check
          %p690 = pneg %p145
        $region46: #{downsample_conv_forward.1} parent=43 // pred_check_branch
          %692 = sbr.rel (%p690) target = $region48
        $region47: #{downsample_conv_forward.1} parent=43 // pred_region
          %s693 = sand.u32 %s130, 1
          %s694 = scalar_lea.sflag [#allocation3], %s693
          %s695 = sand.u32 %s130, 1
          %s696 = smul.addr %s695, 64
          %s697 = scalar_lea.vmem [#allocation2], %s696
          %699 = dma.done %s694, 1024
        $region48: #{downsample_conv_forward.1} parent=43 // pred_fallthru
          _
      $region44: #{downsample_conv_forward.1} parent=5 // pred_fallthru
        _
    $region6: #{downsample_conv_forward.1} parent=1 // loop_footer
      %s17 = sadd.s32 1, %s13
    $region7: #{downsample_conv_forward.1} parent=1 // loop_footer_branch
      %12 = sbr.rel target = $region3
    $region8: #{downsample_conv_forward.1} parent=1 // loop_exit
      _
    %700 = vsyncpa [#allocation3], 1
    %s701 = scalar_lea.sflag [#allocation3], 1
    %702 = vsyncpa %s701, 1

</llo_original>
